<compile_context>
chip_gen: v7x
topology: tpu7x:2x2x1
jax: 0.10.0
libtpu: 0.0.40
codegen_flags: <defaults>
</compile_context>

<pallas_src>
import functools

import jax
import jax.numpy as jnp
from jax.experimental import pallas as pl
from jax.experimental.pallas import tpu as pltpu


def _dilated_conv3x3(x, w_flat, mask9, d, W):
    """3x3 conv, dilation=d, zero 'same' padding, channels-major layout.

    x      : (Cin, H*W) f32  -- flattened spatial on the lane axis
    w_flat : (Cout, 9*Cin) f32 -- column index = (kh*3+kw)*Cin + ci
    mask9  : (9, H*W) f32 -- per-tap validity of the implicit zero padding
    returns (Cout, H*W) f32
    """
    HW = x.shape[1]
    taps = []
    for kh in range(3):
        for kw in range(3):
            off = ((kh - 1) * W + (kw - 1)) * d          # flat shift of this tap
            if off == 0:
                taps.append(x)                           # centre tap: no shift/mask
            else:
                idx = kh * 3 + kw
                # lane roll (XLU slot) + zero the positions whose tap falls in
                # the padding (single VPU multiply with a precomputed f32 mask).
                shifted = pltpu.roll(x, (-off) % HW, 1)
                taps.append(shifted * mask9[idx:idx + 1, :])
    stacked = jnp.concatenate(taps, axis=0)              # (9*Cin, HW)
    # Whole channel contraction as one MXU matmul (lane-dense N = HW).
    return jax.lax.dot_general(
        w_flat, stacked, (((1,), (0,)), ((), ())),
        preferred_element_type=jnp.float32)


def _dcb_kernel(x_ref, w1_ref, wd1_ref, wd2_ref, b1_ref, b2_ref,
                m1_ref, m2_ref, o_ref, *, W, d1, d2):
    x = x_ref[0].astype(jnp.float32)                     # (Cin, H*W)
    m1 = m1_ref[...]                                     # shared by stages 1 & 2
    m2 = m2_ref[...]

    # stage 1: conv1 (BN1 scale pre-folded into weights) -> +BN1 bias -> ReLU
    t = _dilated_conv3x3(x, w1_ref[...], m1, d1, W)
    t = jnp.maximum(t + b1_ref[...], 0.0)

    # stage 2: dilated_conv1 with conv1x1 folded into its centre tap and BN2
    #          scale folded into the weights -> +BN2 bias
    c = _dilated_conv3x3(t, wd1_ref[...], m1, d1, W) + b2_ref[...]

    # stage 3: dilated_conv2 -> ReLU
    out = _dilated_conv3x3(c, wd2_ref[...], m2, d2, W)
    o_ref[0] = jnp.maximum(out, 0.0).astype(o_ref.dtype)  # unmasked 128-lane store


def _tap_masks(H, W, d):
    """Per-tap validity masks of the implicit zero padding, as f32 (9, H*W)."""
    pos = jnp.arange(H * W, dtype=jnp.int32)
    yy = pos // W
    xx = pos % W
    rows = []
    for kh in range(3):
        dy = (kh - 1) * d
        for kw in range(3):
            dx = (kw - 1) * d
            ok = ((yy + dy >= 0) & (yy + dy < H) & (xx + dx >= 0) & (xx + dx < W))
            rows.append(ok)
    return jnp.stack(rows, axis=0).astype(jnp.float32)


def dilated_conv_block(x, w_conv1, w_dconv1, w_conv1x1, w_dconv2,
                       bn1_params, bn2_params, *, dilation1=2, dilation2=3, eps=1e-5):
    """Forward of DilatedConvBlock. x: (B, Cin, H, W) NCHW -> (B, Cout, H, W)."""
    B, Cin, H, W = x.shape
    Cout = w_conv1.shape[0]
    HW = H * W

    def fold_bn(params):                       # inference-mode BN -> (scale, bias)
        gamma, beta, mean, var = params
        scale = gamma / jnp.sqrt(var + eps)
        bias = beta - mean * scale
        return scale.astype(jnp.float32), bias.astype(jnp.float32)

    s1, b1 = fold_bn(bn1_params)
    s2, b2 = fold_bn(bn2_params)

    def flat_taps(w):                          # (Cout, Cin, 3, 3) -> (Cout, 9*Cin)
        co, ci = w.shape[0], w.shape[1]        # column = (kh*3+kw)*Cin + ci
        return jnp.transpose(w, (0, 2, 3, 1)).reshape(co, 9 * ci).astype(jnp.float32)

    # conv1: BN1 scale folded per output channel.
    w1_f = flat_taps(w_conv1) * s1[:, None]

    # dilated_conv1: conv1x1 folded into the centre tap, then BN2 scale folded.
    w11 = w_conv1x1[:, :, 0, 0].astype(jnp.float32)              # (Cout, Cout)
    wd1 = w_dconv1.astype(jnp.float32).at[:, :, 1, 1].add(w11)
    wd1_f = flat_taps(wd1) * s2[:, None]

    # dilated_conv2: no BN afterwards.
    wd2_f = flat_taps(w_dconv2)

    b1_col = b1.reshape(Cout, 1)
    b2_col = b2.reshape(Cout, 1)

    mask_d1 = _tap_masks(H, W, dilation1)      # (9, HW), shared by stages 1 & 2
    mask_d2 = _tap_masks(H, W, dilation2)

    x_flat = x.reshape(B, Cin, HW)             # NCHW is channels-major: pure reshape

    kernel = functools.partial(_dcb_kernel, W=W, d1=dilation1, d2=dilation2)

    out_flat = pl.pallas_call(
        kernel,
        out_shape=jax.ShapeDtypeStruct((B, Cout, HW), x.dtype),
        grid=(B,),
        in_specs=[
            pl.BlockSpec((1, Cin, HW), lambda b: (b, 0, 0)),       # activations
            pl.BlockSpec((Cout, 9 * Cin), lambda b: (0, 0)),       # conv1 (BN1-scaled)
            pl.BlockSpec((Cout, 9 * Cout), lambda b: (0, 0)),      # dconv1 + 1x1 (BN2-scaled)
            pl.BlockSpec((Cout, 9 * Cout), lambda b: (0, 0)),      # dconv2
            pl.BlockSpec((Cout, 1), lambda b: (0, 0)),             # BN1 bias
            pl.BlockSpec((Cout, 1), lambda b: (0, 0)),             # BN2 bias
            pl.BlockSpec((9, HW), lambda b: (0, 0)),               # masks, dilation1
            pl.BlockSpec((9, HW), lambda b: (0, 0)),               # masks, dilation2
        ],
        out_specs=pl.BlockSpec((1, Cout, HW), lambda b: (b, 0, 0)),
        compiler_params=pltpu.CompilerParams(dimension_semantics=("parallel",)),
    )(x_flat, w1_f, wd1_f, wd2_f, b1_col, b2_col, mask_d1, mask_d2)

    return out_flat.reshape(B, Cout, H, W)


def _reference(x, w_conv1, w_dconv1, w_conv1x1, w_dconv2, bn1_params, bn2_params,
               *, dilation1=2, dilation2=3, eps=1e-5):
    hi = jax.lax.Precision.HIGHEST

    def conv(v, w, d):
        return jax.lax.conv_general_dilated(
            v, w, window_strides=(1, 1), padding=((d, d), (d, d)),
            rhs_dilation=(d, d), dimension_numbers=("NCHW", "OIHW", "NCHW"),
            precision=hi)

    def conv1x1(v, w):
        return jax.lax.conv_general_dilated(
            v, w, window_strides=(1, 1), padding="VALID",
            dimension_numbers=("NCHW", "OIHW", "NCHW"), precision=hi)

    def bn(v, params):
        gamma, beta, mean, var = params
        s = (gamma / jnp.sqrt(var + eps))[None, :, None, None]
        return (v - mean[None, :, None, None]) * s + beta[None, :, None, None]

    t = jax.nn.relu(bn(conv(x, w_conv1, dilation1), bn1_params))
    combined = bn(conv(t, w_dconv1, dilation1) + conv1x1(t, w_conv1x1), bn2_params)
    return jax.nn.relu(conv(combined, w_dconv2, dilation2))


if __name__ == "__main__":
    B, Cin, Cout, H, W = 2, 4, 8, 16, 16

    key = jax.random.PRNGKey(0)
    keys = jax.random.split(key, 13)
    x = jax.random.normal(keys[0], (B, Cin, H, W), dtype=jnp.float32)
    w_conv1 = jax.random.normal(keys[1], (Cout, Cin, 3, 3), jnp.float32) * 0.2
    w_dconv1 = jax.random.normal(keys[2], (Cout, Cout, 3, 3), jnp.float32) * 0.2
    w_conv1x1 = jax.random.normal(keys[3], (Cout, Cout, 1, 1), jnp.float32) * 0.2
    w_dconv2 = jax.random.normal(keys[4], (Cout, Cout, 3, 3), jnp.float32) * 0.2

    bn1_params = (1.0 + 0.1 * jax.random.normal(keys[5], (Cout,), jnp.float32),   # gamma
                  0.1 * jax.random.normal(keys[6], (Cout,), jnp.float32),         # beta
                  0.1 * jax.random.normal(keys[7], (Cout,), jnp.float32),         # running_mean
                  jax.random.uniform(keys[8], (Cout,), jnp.float32, 0.5, 1.5))    # running_var
    bn2_params = (1.0 + 0.1 * jax.random.normal(keys[9], (Cout,), jnp.float32),
                  0.1 * jax.random.normal(keys[10], (Cout,), jnp.float32),
                  0.1 * jax.random.normal(keys[11], (Cout,), jnp.float32),
                  jax.random.uniform(keys[12], (Cout,), jnp.float32, 0.5, 1.5))

    out = dilated_conv_block(x, w_conv1, w_dconv1, w_conv1x1, w_dconv2,
                             bn1_params, bn2_params)
    jax.block_until_ready(out)

    ref = _reference(x, w_conv1, w_dconv1, w_conv1x1, w_dconv2, bn1_params, bn2_params)
    assert out.shape == ref.shape == (B, Cout, H, W)
    err = float(jnp.max(jnp.abs(out - ref)))
    assert jnp.allclose(out, ref, atol=2e-3, rtol=2e-3), err

    print("KERNEL_OK")
</pallas_src>

<mosaic_0001>
module attributes {stable_mosaic.version = 11 : i64} {
  func.func @_dcb_kernel(%arg0: i32, %arg1: memref<1x4x256xf32, #tpu.memory_space<vmem>>, %arg2: memref<8x36xf32, #tpu.memory_space<vmem>>, %arg3: memref<8x72xf32, #tpu.memory_space<vmem>>, %arg4: memref<8x72xf32, #tpu.memory_space<vmem>>, %arg5: memref<8x1xf32, #tpu.memory_space<vmem>>, %arg6: memref<8x1xf32, #tpu.memory_space<vmem>>, %arg7: memref<9x256xf32, #tpu.memory_space<vmem>>, %arg8: memref<9x256xf32, #tpu.memory_space<vmem>>, %arg9: memref<1x8x256xf32, #tpu.memory_space<vmem>>) attributes {dimension_semantics = [#tpu.dimension_semantics<parallel>], iteration_bounds = array<i64: 2>, scalar_prefetch = 0 : i64, scratch_operands = 0 : i64, tpu.core_type = #tpu.core_type<tc>, window_params = [{transform_indices = @transform_0, window_bounds = array<i64: 1, 4, 256>}, {pipeline_mode = #tpu.pipeline_mode<synchronous>, transform_indices = @transform_1, window_bounds = array<i64: 8, 36>}, {pipeline_mode = #tpu.pipeline_mode<synchronous>, transform_indices = @transform_2, window_bounds = array<i64: 8, 72>}, {pipeline_mode = #tpu.pipeline_mode<synchronous>, transform_indices = @transform_3, window_bounds = array<i64: 8, 72>}, {pipeline_mode = #tpu.pipeline_mode<synchronous>, transform_indices = @transform_4, window_bounds = array<i64: 8, 1>}, {pipeline_mode = #tpu.pipeline_mode<synchronous>, transform_indices = @transform_5, window_bounds = array<i64: 8, 1>}, {pipeline_mode = #tpu.pipeline_mode<synchronous>, transform_indices = @transform_6, window_bounds = array<i64: 9, 256>}, {pipeline_mode = #tpu.pipeline_mode<synchronous>, transform_indices = @transform_7, window_bounds = array<i64: 9, 256>}, {transform_indices = @transform_8, window_bounds = array<i64: 1, 8, 256>}]} {
    %c0 = arith.constant 0 : index
    %c0_0 = arith.constant 0 : index
    %c0_1 = arith.constant 0 : index
    %0 = vector.load %arg1[%c0, %c0_0, %c0_1] : memref<1x4x256xf32, #tpu.memory_space<vmem>>, vector<1x4x256xf32>
    %1 = vector.shape_cast %0 : vector<1x4x256xf32> to vector<4x256xf32>
    %c0_2 = arith.constant 0 : index
    %c0_3 = arith.constant 0 : index
    %2 = vector.load %arg7[%c0_2, %c0_3] : memref<9x256xf32, #tpu.memory_space<vmem>>, vector<9x256xf32>
    %c0_4 = arith.constant 0 : index
    %c0_5 = arith.constant 0 : index
    %3 = vector.load %arg8[%c0_4, %c0_5] : memref<9x256xf32, #tpu.memory_space<vmem>>, vector<9x256xf32>
    %c0_6 = arith.constant 0 : index
    %c0_7 = arith.constant 0 : index
    %4 = vector.load %arg2[%c0_6, %c0_7] : memref<8x36xf32, #tpu.memory_space<vmem>>, vector<8x36xf32>
    %c34_i32 = arith.constant 34 : i32
    %5 = tpu.dynamic_rotate %1 by %c34_i32 dim 1 : vector<4x256xf32>, i32 -> vector<4x256xf32>
    %6 = vector.extract_strided_slice %2 {offsets = [0, 0], sizes = [1, 256], strides = [1, 1]} : vector<9x256xf32> to vector<1x256xf32>
    %7 = vector.broadcast %6 : vector<1x256xf32> to vector<4x256xf32>
    %8 = arith.mulf %5, %7 : vector<4x256xf32>
    %c32_i32 = arith.constant 32 : i32
    %9 = tpu.dynamic_rotate %1 by %c32_i32 dim 1 : vector<4x256xf32>, i32 -> vector<4x256xf32>
    %10 = vector.extract_strided_slice %2 {offsets = [1, 0], sizes = [1, 256], strides = [1, 1]} : vector<9x256xf32> to vector<1x256xf32>
    %11 = vector.broadcast %10 : vector<1x256xf32> to vector<4x256xf32>
    %12 = arith.mulf %9, %11 : vector<4x256xf32>
    %c30_i32 = arith.constant 30 : i32
    %13 = tpu.dynamic_rotate %1 by %c30_i32 dim 1 : vector<4x256xf32>, i32 -> vector<4x256xf32>
    %14 = vector.extract_strided_slice %2 {offsets = [2, 0], sizes = [1, 256], strides = [1, 1]} : vector<9x256xf32> to vector<1x256xf32>
    %15 = vector.broadcast %14 : vector<1x256xf32> to vector<4x256xf32>
    %16 = arith.mulf %13, %15 : vector<4x256xf32>
    %c2_i32 = arith.constant 2 : i32
    %17 = tpu.dynamic_rotate %1 by %c2_i32 dim 1 : vector<4x256xf32>, i32 -> vector<4x256xf32>
    %18 = vector.extract_strided_slice %2 {offsets = [3, 0], sizes = [1, 256], strides = [1, 1]} : vector<9x256xf32> to vector<1x256xf32>
    %19 = vector.broadcast %18 : vector<1x256xf32> to vector<4x256xf32>
    %20 = arith.mulf %17, %19 : vector<4x256xf32>
    %c254_i32 = arith.constant 254 : i32
    %21 = tpu.dynamic_rotate %1 by %c254_i32 dim 1 : vector<4x256xf32>, i32 -> vector<4x256xf32>
    %22 = vector.extract_strided_slice %2 {offsets = [5, 0], sizes = [1, 256], strides = [1, 1]} : vector<9x256xf32> to vector<1x256xf32>
    %23 = vector.broadcast %22 : vector<1x256xf32> to vector<4x256xf32>
    %24 = arith.mulf %21, %23 : vector<4x256xf32>
    %c226_i32 = arith.constant 226 : i32
    %25 = tpu.dynamic_rotate %1 by %c226_i32 dim 1 : vector<4x256xf32>, i32 -> vector<4x256xf32>
    %26 = vector.extract_strided_slice %2 {offsets = [6, 0], sizes = [1, 256], strides = [1, 1]} : vector<9x256xf32> to vector<1x256xf32>
    %27 = vector.broadcast %26 : vector<1x256xf32> to vector<4x256xf32>
    %28 = arith.mulf %25, %27 : vector<4x256xf32>
    %c224_i32 = arith.constant 224 : i32
    %29 = tpu.dynamic_rotate %1 by %c224_i32 dim 1 : vector<4x256xf32>, i32 -> vector<4x256xf32>
    %30 = vector.extract_strided_slice %2 {offsets = [7, 0], sizes = [1, 256], strides = [1, 1]} : vector<9x256xf32> to vector<1x256xf32>
    %31 = vector.broadcast %30 : vector<1x256xf32> to vector<4x256xf32>
    %32 = arith.mulf %29, %31 : vector<4x256xf32>
    %c222_i32 = arith.constant 222 : i32
    %33 = tpu.dynamic_rotate %1 by %c222_i32 dim 1 : vector<4x256xf32>, i32 -> vector<4x256xf32>
    %34 = vector.extract_strided_slice %2 {offsets = [8, 0], sizes = [1, 256], strides = [1, 1]} : vector<9x256xf32> to vector<1x256xf32>
    %35 = vector.broadcast %34 : vector<1x256xf32> to vector<4x256xf32>
    %36 = arith.mulf %33, %35 : vector<4x256xf32>
    %37 = tpu.concatenate %8, %12, %16, %20, %1, %24, %28, %32, %36 in 0 : vector<4x256xf32>, vector<4x256xf32>, vector<4x256xf32>, vector<4x256xf32>, vector<4x256xf32>, vector<4x256xf32>, vector<4x256xf32>, vector<4x256xf32>, vector<4x256xf32> -> vector<36x256xf32>
    %cst = arith.constant dense<0.000000e+00> : vector<8x256xf32>
    %38 = tpu.matmul %4, %37, %cst {dimension_numbers = #tpu.dot_dimension_numbers<[1], [0], [0], [1], [0, 0, 1, 1], [], []>} : vector<8x36xf32>, vector<36x256xf32>, vector<8x256xf32> -> vector<8x256xf32>
    %c0_8 = arith.constant 0 : index
    %c0_9 = arith.constant 0 : index
    %39 = vector.load %arg5[%c0_8, %c0_9] : memref<8x1xf32, #tpu.memory_space<vmem>>, vector<8x1xf32>
    %40 = vector.broadcast %39 : vector<8x1xf32> to vector<8x256xf32>
    %41 = arith.addf %38, %40 : vector<8x256xf32>
    %cst_10 = arith.constant 0.000000e+00 : f32
    %42 = vector.broadcast %cst_10 : f32 to vector<8x256xf32>
    %43 = arith.maximumf %41, %42 : vector<8x256xf32>
    %c0_11 = arith.constant 0 : index
    %c0_12 = arith.constant 0 : index
    %44 = vector.load %arg3[%c0_11, %c0_12] : memref<8x72xf32, #tpu.memory_space<vmem>>, vector<8x72xf32>
    %c34_i32_13 = arith.constant 34 : i32
    %45 = tpu.dynamic_rotate %43 by %c34_i32_13 dim 1 : vector<8x256xf32>, i32 -> vector<8x256xf32>
    %46 = vector.extract_strided_slice %2 {offsets = [0, 0], sizes = [1, 256], strides = [1, 1]} : vector<9x256xf32> to vector<1x256xf32>
    %47 = vector.broadcast %46 : vector<1x256xf32> to vector<8x256xf32>
    %48 = arith.mulf %45, %47 : vector<8x256xf32>
    %c32_i32_14 = arith.constant 32 : i32
    %49 = tpu.dynamic_rotate %43 by %c32_i32_14 dim 1 : vector<8x256xf32>, i32 -> vector<8x256xf32>
    %50 = vector.extract_strided_slice %2 {offsets = [1, 0], sizes = [1, 256], strides = [1, 1]} : vector<9x256xf32> to vector<1x256xf32>
    %51 = vector.broadcast %50 : vector<1x256xf32> to vector<8x256xf32>
    %52 = arith.mulf %49, %51 : vector<8x256xf32>
    %c30_i32_15 = arith.constant 30 : i32
    %53 = tpu.dynamic_rotate %43 by %c30_i32_15 dim 1 : vector<8x256xf32>, i32 -> vector<8x256xf32>
    %54 = vector.extract_strided_slice %2 {offsets = [2, 0], sizes = [1, 256], strides = [1, 1]} : vector<9x256xf32> to vector<1x256xf32>
    %55 = vector.broadcast %54 : vector<1x256xf32> to vector<8x256xf32>
    %56 = arith.mulf %53, %55 : vector<8x256xf32>
    %c2_i32_16 = arith.constant 2 : i32
    %57 = tpu.dynamic_rotate %43 by %c2_i32_16 dim 1 : vector<8x256xf32>, i32 -> vector<8x256xf32>
    %58 = vector.extract_strided_slice %2 {offsets = [3, 0], sizes = [1, 256], strides = [1, 1]} : vector<9x256xf32> to vector<1x256xf32>
    %59 = vector.broadcast %58 : vector<1x256xf32> to vector<8x256xf32>
    %60 = arith.mulf %57, %59 : vector<8x256xf32>
    %c254_i32_17 = arith.constant 254 : i32
    %61 = tpu.dynamic_rotate %43 by %c254_i32_17 dim 1 : vector<8x256xf32>, i32 -> vector<8x256xf32>
    %62 = vector.extract_strided_slice %2 {offsets = [5, 0], sizes = [1, 256], strides = [1, 1]} : vector<9x256xf32> to vector<1x256xf32>
    %63 = vector.broadcast %62 : vector<1x256xf32> to vector<8x256xf32>
    %64 = arith.mulf %61, %63 : vector<8x256xf32>
    %c226_i32_18 = arith.constant 226 : i32
    %65 = tpu.dynamic_rotate %43 by %c226_i32_18 dim 1 : vector<8x256xf32>, i32 -> vector<8x256xf32>
    %66 = vector.extract_strided_slice %2 {offsets = [6, 0], sizes = [1, 256], strides = [1, 1]} : vector<9x256xf32> to vector<1x256xf32>
    %67 = vector.broadcast %66 : vector<1x256xf32> to vector<8x256xf32>
    %68 = arith.mulf %65, %67 : vector<8x256xf32>
    %c224_i32_19 = arith.constant 224 : i32
    %69 = tpu.dynamic_rotate %43 by %c224_i32_19 dim 1 : vector<8x256xf32>, i32 -> vector<8x256xf32>
    %70 = vector.extract_strided_slice %2 {offsets = [7, 0], sizes = [1, 256], strides = [1, 1]} : vector<9x256xf32> to vector<1x256xf32>
    %71 = vector.broadcast %70 : vector<1x256xf32> to vector<8x256xf32>
    %72 = arith.mulf %69, %71 : vector<8x256xf32>
    %c222_i32_20 = arith.constant 222 : i32
    %73 = tpu.dynamic_rotate %43 by %c222_i32_20 dim 1 : vector<8x256xf32>, i32 -> vector<8x256xf32>
    %74 = vector.extract_strided_slice %2 {offsets = [8, 0], sizes = [1, 256], strides = [1, 1]} : vector<9x256xf32> to vector<1x256xf32>
    %75 = vector.broadcast %74 : vector<1x256xf32> to vector<8x256xf32>
    %76 = arith.mulf %73, %75 : vector<8x256xf32>
    %77 = tpu.concatenate %48, %52, %56, %60, %43, %64, %68, %72, %76 in 0 : vector<8x256xf32>, vector<8x256xf32>, vector<8x256xf32>, vector<8x256xf32>, vector<8x256xf32>, vector<8x256xf32>, vector<8x256xf32>, vector<8x256xf32>, vector<8x256xf32> -> vector<72x256xf32>
    %cst_21 = arith.constant dense<0.000000e+00> : vector<8x256xf32>
    %78 = tpu.matmul %44, %77, %cst_21 {dimension_numbers = #tpu.dot_dimension_numbers<[1], [0], [0], [1], [0, 0, 1, 1], [], []>} : vector<8x72xf32>, vector<72x256xf32>, vector<8x256xf32> -> vector<8x256xf32>
    %c0_22 = arith.constant 0 : index
    %c0_23 = arith.constant 0 : index
    %79 = vector.load %arg6[%c0_22, %c0_23] : memref<8x1xf32, #tpu.memory_space<vmem>>, vector<8x1xf32>
    %80 = vector.broadcast %79 : vector<8x1xf32> to vector<8x256xf32>
    %81 = arith.addf %78, %80 : vector<8x256xf32>
    %c0_24 = arith.constant 0 : index
    %c0_25 = arith.constant 0 : index
    %82 = vector.load %arg4[%c0_24, %c0_25] : memref<8x72xf32, #tpu.memory_space<vmem>>, vector<8x72xf32>
    %c51_i32 = arith.constant 51 : i32
    %83 = tpu.dynamic_rotate %81 by %c51_i32 dim 1 : vector<8x256xf32>, i32 -> vector<8x256xf32>
    %84 = vector.extract_strided_slice %3 {offsets = [0, 0], sizes = [1, 256], strides = [1, 1]} : vector<9x256xf32> to vector<1x256xf32>
    %85 = vector.broadcast %84 : vector<1x256xf32> to vector<8x256xf32>
    %86 = arith.mulf %83, %85 : vector<8x256xf32>
    %c48_i32 = arith.constant 48 : i32
    %87 = tpu.dynamic_rotate %81 by %c48_i32 dim 1 : vector<8x256xf32>, i32 -> vector<8x256xf32>
    %88 = vector.extract_strided_slice %3 {offsets = [1, 0], sizes = [1, 256], strides = [1, 1]} : vector<9x256xf32> to vector<1x256xf32>
    %89 = vector.broadcast %88 : vector<1x256xf32> to vector<8x256xf32>
    %90 = arith.mulf %87, %89 : vector<8x256xf32>
    %c45_i32 = arith.constant 45 : i32
    %91 = tpu.dynamic_rotate %81 by %c45_i32 dim 1 : vector<8x256xf32>, i32 -> vector<8x256xf32>
    %92 = vector.extract_strided_slice %3 {offsets = [2, 0], sizes = [1, 256], strides = [1, 1]} : vector<9x256xf32> to vector<1x256xf32>
    %93 = vector.broadcast %92 : vector<1x256xf32> to vector<8x256xf32>
    %94 = arith.mulf %91, %93 : vector<8x256xf32>
    %c3_i32 = arith.constant 3 : i32
    %95 = tpu.dynamic_rotate %81 by %c3_i32 dim 1 : vector<8x256xf32>, i32 -> vector<8x256xf32>
    %96 = vector.extract_strided_slice %3 {offsets = [3, 0], sizes = [1, 256], strides = [1, 1]} : vector<9x256xf32> to vector<1x256xf32>
    %97 = vector.broadcast %96 : vector<1x256xf32> to vector<8x256xf32>
    %98 = arith.mulf %95, %97 : vector<8x256xf32>
    %c253_i32 = arith.constant 253 : i32
    %99 = tpu.dynamic_rotate %81 by %c253_i32 dim 1 : vector<8x256xf32>, i32 -> vector<8x256xf32>
    %100 = vector.extract_strided_slice %3 {offsets = [5, 0], sizes = [1, 256], strides = [1, 1]} : vector<9x256xf32> to vector<1x256xf32>
    %101 = vector.broadcast %100 : vector<1x256xf32> to vector<8x256xf32>
    %102 = arith.mulf %99, %101 : vector<8x256xf32>
    %c211_i32 = arith.constant 211 : i32
    %103 = tpu.dynamic_rotate %81 by %c211_i32 dim 1 : vector<8x256xf32>, i32 -> vector<8x256xf32>
    %104 = vector.extract_strided_slice %3 {offsets = [6, 0], sizes = [1, 256], strides = [1, 1]} : vector<9x256xf32> to vector<1x256xf32>
    %105 = vector.broadcast %104 : vector<1x256xf32> to vector<8x256xf32>
    %106 = arith.mulf %103, %105 : vector<8x256xf32>
    %c208_i32 = arith.constant 208 : i32
    %107 = tpu.dynamic_rotate %81 by %c208_i32 dim 1 : vector<8x256xf32>, i32 -> vector<8x256xf32>
    %108 = vector.extract_strided_slice %3 {offsets = [7, 0], sizes = [1, 256], strides = [1, 1]} : vector<9x256xf32> to vector<1x256xf32>
    %109 = vector.broadcast %108 : vector<1x256xf32> to vector<8x256xf32>
    %110 = arith.mulf %107, %109 : vector<8x256xf32>
    %c205_i32 = arith.constant 205 : i32
    %111 = tpu.dynamic_rotate %81 by %c205_i32 dim 1 : vector<8x256xf32>, i32 -> vector<8x256xf32>
    %112 = vector.extract_strided_slice %3 {offsets = [8, 0], sizes = [1, 256], strides = [1, 1]} : vector<9x256xf32> to vector<1x256xf32>
    %113 = vector.broadcast %112 : vector<1x256xf32> to vector<8x256xf32>
    %114 = arith.mulf %111, %113 : vector<8x256xf32>
    %115 = tpu.concatenate %86, %90, %94, %98, %81, %102, %106, %110, %114 in 0 : vector<8x256xf32>, vector<8x256xf32>, vector<8x256xf32>, vector<8x256xf32>, vector<8x256xf32>, vector<8x256xf32>, vector<8x256xf32>, vector<8x256xf32>, vector<8x256xf32> -> vector<72x256xf32>
    %cst_26 = arith.constant dense<0.000000e+00> : vector<8x256xf32>
    %116 = tpu.matmul %82, %115, %cst_26 {dimension_numbers = #tpu.dot_dimension_numbers<[1], [0], [0], [1], [0, 0, 1, 1], [], []>} : vector<8x72xf32>, vector<72x256xf32>, vector<8x256xf32> -> vector<8x256xf32>
    %cst_27 = arith.constant 0.000000e+00 : f32
    %117 = vector.broadcast %cst_27 : f32 to vector<8x256xf32>
    %118 = arith.maximumf %116, %117 : vector<8x256xf32>
    %c0_28 = arith.constant 0 : index
    %c0_29 = arith.constant 0 : index
    %c0_30 = arith.constant 0 : index
    %119 = vector.load %arg9[%c0_28, %c0_29, %c0_30] : memref<1x8x256xf32, #tpu.memory_space<vmem>>, vector<1x8x256xf32>
    %120 = vector.shape_cast %119 : vector<1x8x256xf32> to vector<8x256xf32>
    %121 = vector.shape_cast %118 : vector<8x256xf32> to vector<1x8x256xf32>
    tpu.vector_store %arg9[%c0_28, %c0_29, %c0_30], %121 {strides = array<i32>} : memref<1x8x256xf32, #tpu.memory_space<vmem>>, vector<1x8x256xf32>,
    return
  }
  func.func @transform_0(%arg0: i32) -> (i32, i32, i32) {
    %c0_i32 = arith.constant 0 : i32
    %c0_i32_0 = arith.constant 0 : i32
    %c0_i32_1 = arith.constant 0 : i32
    return %arg0, %c0_i32, %c0_i32_0 : i32, i32, i32
  }
  func.func @transform_1(%arg0: i32) -> (i32, i32) {
    %c0_i32 = arith.constant 0 : i32
    %c0_i32_0 = arith.constant 0 : i32
    %c0_i32_1 = arith.constant 0 : i32
    return %c0_i32, %c0_i32_0 : i32, i32
  }
  func.func @transform_2(%arg0: i32) -> (i32, i32) {
    %c0_i32 = arith.constant 0 : i32
    %c0_i32_0 = arith.constant 0 : i32
    %c0_i32_1 = arith.constant 0 : i32
    return %c0_i32, %c0_i32_0 : i32, i32
  }
  func.func @transform_3(%arg0: i32) -> (i32, i32) {
    %c0_i32 = arith.constant 0 : i32
    %c0_i32_0 = arith.constant 0 : i32
    %c0_i32_1 = arith.constant 0 : i32
    return %c0_i32, %c0_i32_0 : i32, i32
  }
  func.func @transform_4(%arg0: i32) -> (i32, i32) {
    %c0_i32 = arith.constant 0 : i32
    %c0_i32_0 = arith.constant 0 : i32
    %c0_i32_1 = arith.constant 0 : i32
    return %c0_i32, %c0_i32_0 : i32, i32
  }
  func.func @transform_5(%arg0: i32) -> (i32, i32) {
    %c0_i32 = arith.constant 0 : i32
    %c0_i32_0 = arith.constant 0 : i32
    %c0_i32_1 = arith.constant 0 : i32
    return %c0_i32, %c0_i32_0 : i32, i32
  }
  func.func @transform_6(%arg0: i32) -> (i32, i32) {
    %c0_i32 = arith.constant 0 : i32
    %c0_i32_0 = arith.constant 0 : i32
    %c0_i32_1 = arith.constant 0 : i32
    return %c0_i32, %c0_i32_0 : i32, i32
  }
  func.func @transform_7(%arg0: i32) -> (i32, i32) {
    %c0_i32 = arith.constant 0 : i32
    %c0_i32_0 = arith.constant 0 : i32
    %c0_i32_1 = arith.constant 0 : i32
    return %c0_i32, %c0_i32_0 : i32, i32
  }
  func.func @transform_8(%arg0: i32) -> (i32, i32, i32) {
    %c0_i32 = arith.constant 0 : i32
    %c0_i32_0 = arith.constant 0 : i32
    %c0_i32_1 = arith.constant 0 : i32
    return %arg0, %c0_i32, %c0_i32_0 : i32, i32, i32
  }
}

</mosaic_0001>

<llo_original>
// kernel: tpu_custom_call.1
$region0: #{tpu_custom_call.1}
  #allocation0 [shape = 'u32[]', space=smem, size = 0x4, offset = 0x4, fixed_abs, tag = 'smem constant byte address 0x4 - core index']
  #allocation1 [shape = 'u32[144,128]{1,0:T(1,128)}', space=vmem, size = 0x12000, scoped, tag = 'internal scratch']
  %s0 = inlined_call_operand.hbm [shape: f32[2,4,256], index: 0, kind: input, shape index: {}]
  %s1 = inlined_call_operand.vmem [shape: f32[8,36], index: 1, kind: input, shape index: {}]
  %s2 = inlined_call_operand.hbm [shape: f32[8,72], index: 2, kind: input, shape index: {}]
  %s3 = inlined_call_operand.hbm [shape: f32[8,72], index: 3, kind: input, shape index: {}]
  %s4 = inlined_call_operand.vmem [shape: f32[8,1], index: 4, kind: input, shape index: {}]
  %s5 = inlined_call_operand.vmem [shape: f32[8,1], index: 5, kind: input, shape index: {}]
  %s6 = inlined_call_operand.vmem [shape: f32[9,256], index: 6, kind: input, shape index: {}]
  %s7 = inlined_call_operand.hbm [shape: f32[9,256], index: 7, kind: input, shape index: {}]
  %s8 = inlined_call_operand.hbm [shape: f32[2,8,256], index: 8, kind: output, shape index: {}]
  %s9 = sld [smem:[#allocation0]]
  $region81: #{tpu_custom_call.1} parent=0
    _
  %s11 = ssub.s32 1, %s9
  %s12 = scalar_select 0, %s11, %s9
  $region1: #{tpu_custom_call.1} parent=0
    #allocation2 [shape = 'u8[8192]{0}', space=vmem, size = 0x2000, scoped, tag = 'input window, operand 0']
    #allocation3 [shape = 's32[2]{0}', space=sflag, size = 0x8, scoped, tag = 'scoped memory for tpu_custom_call.1']
    #allocation4 [shape = 's32[2]{0}', space=sflag, size = 0x8, scoped, tag = 'scoped memory for tpu_custom_call.1']
    #allocation5 [shape = 'u8[4096]{0}', space=vmem, size = 0x1000, scoped, tag = 'input window, operand 2, single buffered']
    #allocation6 [shape = 's32[1]{0}', space=sflag, size = 0x4, scoped, tag = 'scoped memory for tpu_custom_call.1']
    #allocation7 [shape = 'u8[4096]{0}', space=vmem, size = 0x1000, scoped, tag = 'input window, operand 3, single buffered']
    #allocation8 [shape = 'u8[16384]{0}', space=vmem, size = 0x4000, scoped, tag = 'input window, operand 7, single buffered']
    #allocation9 [shape = 's32[1]{0}', space=sflag, size = 0x4, scoped, tag = 'scoped memory for tpu_custom_call.1']
    #allocation10 [shape = 'u8[16384]{0}', space=vmem, size = 0x4000, scoped, tag = 'output window, operand 0']
    %13 = vsyncpa [#allocation3], 0
    %s14 = scalar_lea.sflag [#allocation3], 1
    %15 = vsyncpa %s14, 0
    %16 = vsyncpa [#allocation6], 0
    %17 = vsyncpa [#allocation9], 0
    %18 = vsyncpa [#allocation4], 0
    %s19 = scalar_lea.sflag [#allocation4], 1
    %20 = vsyncpa %s19, 0
    loop: start=0, step=1, limit=4
    $region2: #{tpu_custom_call.1} parent=1 // loop_pre_header
      _
    $region3: #{tpu_custom_call.1} parent=1 // loop_header
      %s22 = sphi 0, %s26
      %p23 = scmp.ge.s32.totalorder %s22, 4
      %s32 = sphi 0, %s34
      %s35 = sphi 0, %s32
      %s36 = sphi 0, %s35
      %s52 = sphi 0, %s36
      %s56 = sphi 0, %s56
      %s58 = sphi 0, %s56
      %s59 = sphi 0, %s58
      %s73 = sphi 0, %s59
      %s77 = sphi 0, %s77
      %s79 = sphi 0, %s77
      %s80 = sphi 0, %s79
      %s94 = sphi 0, %s80
      %s98 = sphi 0, %s98
      %s100 = sphi 0, %s98
      %s101 = sphi 0, %s100
      %s115 = sphi 0, %s101
      %s119 = sphi 0, %s119
      %s121 = sphi 0, %s119
      %s122 = sphi 0, %s121
      %s136 = sphi 0, %s122
      %s140 = sphi 0, %s140
      %s142 = sphi 0, %s140
      %s143 = sphi 0, %s142
      %s157 = sphi 0, %s143
      %s161 = sphi 0, %s161
      %s163 = sphi 0, %s161
      %s164 = sphi 0, %s163
      %s178 = sphi 0, %s164
      %s182 = sphi 0, %s182
      %s184 = sphi 0, %s182
      %s185 = sphi 0, %s184
      %s199 = sphi 0, %s185
      %s205 = sphi 0, %s207
      %s208 = sphi 0, %s205
      %s209 = sphi 0, %s208
      %s225 = sphi 0, %s209
    $region4: #{tpu_custom_call.1} parent=1 // loop_header_branch
      %25 = sbr.rel (%p23) target = $region8
    $region5: #{tpu_custom_call.1} parent=1 // loop_body
      %s27 = ssub.s32 %s22, 1
      %s28 = ssub.s32 %s22, 2
      %s29 = sadd.s32 %s22, 1
      %s30 = ssub.s32 %s22, %s29
      %p31 = scmp.eq.s32.totalorder %s30, 0
      %s33 = sadd.s32 %s32, 1
      %s34 = scalar_select %p31, %s32, %s33
      %p37 = pneg %p31
      %p38 = scmp.eq.s32.totalorder %s22, 1
      %p39 = por %p37, %p38
      %p40 = scmp.ne.s32.totalorder %s32, %s35
      %p41 = scmp.eq.s32.totalorder %s22, 0
      %p42 = por %p40, %p41
      %p43 = scmp.ne.s32.totalorder %s32, %s35
      %p44 = scmp.eq.s32.totalorder %s27, 1
      %p45 = por %p43, %p44
      %p46 = scmp.ne.s32.totalorder %s35, %s36
      %p47 = scmp.eq.s32.totalorder %s27, 0
      %p48 = por %p46, %p47
      %p49 = scmp.ne.s32.totalorder %s35, %s36
      %p50 = scmp.eq.s32.totalorder %s28, 1
      %p51 = por %p49, %p50
      %p53 = scmp.ne.s32.totalorder %s36, %s52
      %p54 = scmp.eq.s32.totalorder %s28, 0
      %p55 = por %p53, %p54
      %s57 = sadd.s32 %s56, 1
      %p60 = scmp.eq.s32.totalorder %s22, 1
      %p61 = scmp.ne.s32.totalorder %s56, %s58
      %p62 = scmp.eq.s32.totalorder %s22, 0
      %p63 = por %p61, %p62
      %p64 = scmp.ne.s32.totalorder %s56, %s58
      %p65 = scmp.eq.s32.totalorder %s27, 1
      %p66 = por %p64, %p65
      %p67 = scmp.ne.s32.totalorder %s58, %s59
      %p68 = scmp.eq.s32.totalorder %s27, 0
      %p69 = por %p67, %p68
      %p70 = scmp.ne.s32.totalorder %s58, %s59
      %p71 = scmp.eq.s32.totalorder %s28, 1
      %p72 = por %p70, %p71
      %p74 = scmp.ne.s32.totalorder %s59, %s73
      %p75 = scmp.eq.s32.totalorder %s28, 0
      %p76 = por %p74, %p75
      %s78 = sadd.s32 %s77, 1
      %p81 = scmp.eq.s32.totalorder %s22, 1
      %p82 = scmp.ne.s32.totalorder %s77, %s79
      %p83 = scmp.eq.s32.totalorder %s22, 0
      %p84 = por %p82, %p83
      %p85 = scmp.ne.s32.totalorder %s77, %s79
      %p86 = scmp.eq.s32.totalorder %s27, 1
      %p87 = por %p85, %p86
      %p88 = scmp.ne.s32.totalorder %s79, %s80
      %p89 = scmp.eq.s32.totalorder %s27, 0
      %p90 = por %p88, %p89
      %p91 = scmp.ne.s32.totalorder %s79, %s80
      %p92 = scmp.eq.s32.totalorder %s28, 1
      %p93 = por %p91, %p92
      %p95 = scmp.ne.s32.totalorder %s80, %s94
      %p96 = scmp.eq.s32.totalorder %s28, 0
      %p97 = por %p95, %p96
      %s99 = sadd.s32 %s98, 1
      %p102 = scmp.eq.s32.totalorder %s22, 1
      %p103 = scmp.ne.s32.totalorder %s98, %s100
      %p104 = scmp.eq.s32.totalorder %s22, 0
      %p105 = por %p103, %p104
      %p106 = scmp.ne.s32.totalorder %s98, %s100
      %p107 = scmp.eq.s32.totalorder %s27, 1
      %p108 = por %p106, %p107
      %p109 = scmp.ne.s32.totalorder %s100, %s101
      %p110 = scmp.eq.s32.totalorder %s27, 0
      %p111 = por %p109, %p110
      %p112 = scmp.ne.s32.totalorder %s100, %s101
      %p113 = scmp.eq.s32.totalorder %s28, 1
      %p114 = por %p112, %p113
      %p116 = scmp.ne.s32.totalorder %s101, %s115
      %p117 = scmp.eq.s32.totalorder %s28, 0
      %p118 = por %p116, %p117
      %s120 = sadd.s32 %s119, 1
      %p123 = scmp.eq.s32.totalorder %s22, 1
      %p124 = scmp.ne.s32.totalorder %s119, %s121
      %p125 = scmp.eq.s32.totalorder %s22, 0
      %p126 = por %p124, %p125
      %p127 = scmp.ne.s32.totalorder %s119, %s121
      %p128 = scmp.eq.s32.totalorder %s27, 1
      %p129 = por %p127, %p128
      %p130 = scmp.ne.s32.totalorder %s121, %s122
      %p131 = scmp.eq.s32.totalorder %s27, 0
      %p132 = por %p130, %p131
      %p133 = scmp.ne.s32.totalorder %s121, %s122
      %p134 = scmp.eq.s32.totalorder %s28, 1
      %p135 = por %p133, %p134
      %p137 = scmp.ne.s32.totalorder %s122, %s136
      %p138 = scmp.eq.s32.totalorder %s28, 0
      %p139 = por %p137, %p138
      %s141 = sadd.s32 %s140, 1
      %p144 = scmp.eq.s32.totalorder %s22, 1
      %p145 = scmp.ne.s32.totalorder %s140, %s142
      %p146 = scmp.eq.s32.totalorder %s22, 0
      %p147 = por %p145, %p146
      %p148 = scmp.ne.s32.totalorder %s140, %s142
      %p149 = scmp.eq.s32.totalorder %s27, 1
      %p150 = por %p148, %p149
      %p151 = scmp.ne.s32.totalorder %s142, %s143
      %p152 = scmp.eq.s32.totalorder %s27, 0
      %p153 = por %p151, %p152
      %p154 = scmp.ne.s32.totalorder %s142, %s143
      %p155 = scmp.eq.s32.totalorder %s28, 1
      %p156 = por %p154, %p155
      %p158 = scmp.ne.s32.totalorder %s143, %s157
      %p159 = scmp.eq.s32.totalorder %s28, 0
      %p160 = por %p158, %p159
      %s162 = sadd.s32 %s161, 1
      %p165 = scmp.eq.s32.totalorder %s22, 1
      %p166 = scmp.ne.s32.totalorder %s161, %s163
      %p167 = scmp.eq.s32.totalorder %s22, 0
      %p168 = por %p166, %p167
      %p169 = scmp.ne.s32.totalorder %s161, %s163
      %p170 = scmp.eq.s32.totalorder %s27, 1
      %p171 = por %p169, %p170
      %p172 = scmp.ne.s32.totalorder %s163, %s164
      %p173 = scmp.eq.s32.totalorder %s27, 0
      %p174 = por %p172, %p173
      %p175 = scmp.ne.s32.totalorder %s163, %s164
      %p176 = scmp.eq.s32.totalorder %s28, 1
      %p177 = por %p175, %p176
      %p179 = scmp.ne.s32.totalorder %s164, %s178
      %p180 = scmp.eq.s32.totalorder %s28, 0
      %p181 = por %p179, %p180
      %s183 = sadd.s32 %s182, 1
      %p186 = scmp.eq.s32.totalorder %s22, 1
      %p187 = scmp.ne.s32.totalorder %s182, %s184
      %p188 = scmp.eq.s32.totalorder %s22, 0
      %p189 = por %p187, %p188
      %p190 = scmp.ne.s32.totalorder %s182, %s184
      %p191 = scmp.eq.s32.totalorder %s27, 1
      %p192 = por %p190, %p191
      %p193 = scmp.ne.s32.totalorder %s184, %s185
      %p194 = scmp.eq.s32.totalorder %s27, 0
      %p195 = por %p193, %p194
      %p196 = scmp.ne.s32.totalorder %s184, %s185
      %p197 = scmp.eq.s32.totalorder %s28, 1
      %p198 = por %p196, %p197
      %p200 = scmp.ne.s32.totalorder %s185, %s199
      %p201 = scmp.eq.s32.totalorder %s28, 0
      %p202 = por %p200, %p201
      %s203 = ssub.s32 %s22, %s29
      %p204 = scmp.eq.s32.totalorder %s203, 0
      %s206 = sadd.s32 %s205, 1
      %s207 = scalar_select %p204, %s205, %s206
      %p210 = pneg %p204
      %p211 = scmp.eq.s32.totalorder %s22, 1
      %p212 = por %p210, %p211
      %p213 = scmp.ne.s32.totalorder %s205, %s208
      %p214 = scmp.eq.s32.totalorder %s22, 0
      %p215 = por %p213, %p214
      %p216 = scmp.ne.s32.totalorder %s205, %s208
      %p217 = scmp.eq.s32.totalorder %s27, 1
      %p218 = por %p216, %p217
      %p219 = scmp.ne.s32.totalorder %s208, %s209
      %p220 = scmp.eq.s32.totalorder %s27, 0
      %p221 = por %p219, %p220
      %p222 = scmp.ne.s32.totalorder %s208, %s209
      %p223 = scmp.eq.s32.totalorder %s28, 1
      %p224 = por %p222, %p223
      %p226 = scmp.ne.s32.totalorder %s209, %s225
      %p227 = scmp.eq.s32.totalorder %s28, 0
      %p228 = por %p226, %p227
      %p229 = scmp.le.s32.totalorder 1, %s22
      %p230 = scmp.lt.s32.totalorder %s22, 3
      %p231 = pnand %p229, %p230
      %p232 = pneg %p231
      // Predicated region
      $region9: #{tpu_custom_call.1} parent=5 // pred_check
        _
      $region10: #{tpu_custom_call.1} parent=5 // pred_check_branch
        %234 = sbr.rel (%p231) target = $region12
      $region11: #{tpu_custom_call.1} parent=5 // pred_region
        %s235 = ssub.s32 %s22, 1
        // Predicated region
        $region13: #{tpu_custom_call.1} parent=11 // pred_check
          %p236 = pneg %p69
        $region14: #{tpu_custom_call.1} parent=11 // pred_check_branch
          %238 = sbr.rel (%p236) target = $region16
        $region15: #{tpu_custom_call.1} parent=11 // pred_region
          _
        $region16: #{tpu_custom_call.1} parent=11 // pred_fallthru
          _
        // Predicated region
        $region17: #{tpu_custom_call.1} parent=11 // pred_check
          %p239 = pneg %p90
        $region18: #{tpu_custom_call.1} parent=11 // pred_check_branch
          %241 = sbr.rel (%p239) target = $region20
        $region19: #{tpu_custom_call.1} parent=11 // pred_region
          %s243 = ssub.s32 128, 128
          %244 = vsyncadd [#allocation6], %s243
          %s246 = sshll.u32 [#allocation5], 4
          %s247 = int_to_ptr.vmem [resolvable:$true] %s246
          %249 = dma.hbm_to_vmem [thread:$0]  %s2, 128, %s247, [#allocation6]
        $region20: #{tpu_custom_call.1} parent=11 // pred_fallthru
          _
        // Predicated region
        $region21: #{tpu_custom_call.1} parent=11 // pred_check
          %p250 = pneg %p111
        $region22: #{tpu_custom_call.1} parent=11 // pred_check_branch
          %252 = sbr.rel (%p250) target = $region24
        $region23: #{tpu_custom_call.1} parent=11 // pred_region
          %s254 = ssub.s32 128, 128
          %255 = vsyncadd [#allocation6], %s254
          %s257 = sshll.u32 [#allocation7], 4
          %s258 = int_to_ptr.vmem [resolvable:$true] %s257
          %260 = dma.hbm_to_vmem [thread:$0]  %s3, 128, %s258, [#allocation6]
        $region24: #{tpu_custom_call.1} parent=11 // pred_fallthru
          _
        // Predicated region
        $region25: #{tpu_custom_call.1} parent=11 // pred_check
          %p261 = pneg %p132
        $region26: #{tpu_custom_call.1} parent=11 // pred_check_branch
          %263 = sbr.rel (%p261) target = $region28
        $region27: #{tpu_custom_call.1} parent=11 // pred_region
          _
        $region28: #{tpu_custom_call.1} parent=11 // pred_fallthru
          _
        // Predicated region
        $region29: #{tpu_custom_call.1} parent=11 // pred_check
          %p264 = pneg %p153
        $region30: #{tpu_custom_call.1} parent=11 // pred_check_branch
          %266 = sbr.rel (%p264) target = $region32
        $region31: #{tpu_custom_call.1} parent=11 // pred_region
          _
        $region32: #{tpu_custom_call.1} parent=11 // pred_fallthru
          _
        // Predicated region
        $region33: #{tpu_custom_call.1} parent=11 // pred_check
          %p267 = pneg %p174
        $region34: #{tpu_custom_call.1} parent=11 // pred_check_branch
          %269 = sbr.rel (%p267) target = $region36
        $region35: #{tpu_custom_call.1} parent=11 // pred_region
          _
        $region36: #{tpu_custom_call.1} parent=11 // pred_fallthru
          _
        // Predicated region
        $region37: #{tpu_custom_call.1} parent=11 // pred_check
          %p270 = pneg %p195
        $region38: #{tpu_custom_call.1} parent=11 // pred_check_branch
          %272 = sbr.rel (%p270) target = $region40
        $region39: #{tpu_custom_call.1} parent=11 // pred_region
          %s274 = ssub.s32 512, 512
          %275 = vsyncadd [#allocation9], %s274
          %s276 = sshll.u32 [#allocation8], 4
          %s277 = int_to_ptr.vmem [resolvable:$true] %s276
          %282 = dma.hbm_to_vmem [thread:$0]  %s7, 512, %s277, [#allocation9], 256, 256, 16
        $region40: #{tpu_custom_call.1} parent=11 // pred_fallthru
          _
      $region12: #{tpu_custom_call.1} parent=5 // pred_fallthru
        _
      %p283 = scmp.lt.s32.totalorder %s22, 2
      // Predicated region
      $region41: #{tpu_custom_call.1} parent=5 // pred_check
        %p284 = pneg %p283
      $region42: #{tpu_custom_call.1} parent=5 // pred_check_branch
        %286 = sbr.rel (%p284) target = $region44
      $region43: #{tpu_custom_call.1} parent=5 // pred_region
        // Predicated region
        $region45: #{tpu_custom_call.1} parent=43 // pred_check
          %p287 = pneg %p42
        $region46: #{tpu_custom_call.1} parent=43 // pred_check_branch
          %289 = sbr.rel (%p287) target = $region48
        $region47: #{tpu_custom_call.1} parent=43 // pred_region
          %s290 = sand.u32 %s32, 1
          %s291 = scalar_lea.sflag [#allocation3], %s290
          %s292 = sand.u32 %s32, 1
          %s293 = smul.addr %s292, 8
          %s294 = scalar_lea.vmem [#allocation2], %s293
          %s296 = ssub.s32 128, 128
          %297 = vsyncadd %s291, %s296
          %s298 = smul.addr %s22, 2
          %s299 = smul.addr %s298, 64
          %s300 = scalar_lea.hbm %s0, %s299
          %s302 = sshll.u32 %s294, 4
          %s303 = int_to_ptr.vmem [resolvable:$true] %s302
          %305 = dma.hbm_to_vmem [thread:$0]  %s300, 128, %s303, %s291
        $region48: #{tpu_custom_call.1} parent=43 // pred_fallthru
          _
      $region44: #{tpu_custom_call.1} parent=5 // pred_fallthru
        _
      %p306 = scmp.le.s32.totalorder 1, %s22
      %p307 = scmp.lt.s32.totalorder %s22, 3
      %p308 = pnand %p306, %p307
      %p309 = pneg %p308
      // Predicated region
      $region49: #{tpu_custom_call.1} parent=5 // pred_check
        _
      $region50: #{tpu_custom_call.1} parent=5 // pred_check_branch
        %311 = sbr.rel (%p308) target = $region52
      $region51: #{tpu_custom_call.1} parent=5 // pred_region
        %s312 = ssub.s32 %s22, 1
        %s313 = sand.u32 %s35, 1
        %s314 = scalar_lea.sflag [#allocation3], %s313
        %s315 = sand.u32 %s35, 1
        %s316 = smul.addr %s315, 8
        %s317 = scalar_lea.vmem [#allocation2], %s316
        // Predicated region
        $region53: #{tpu_custom_call.1} parent=51 // pred_check
          %p318 = pneg %p48
        $region54: #{tpu_custom_call.1} parent=51 // pred_check_branch
          %320 = sbr.rel (%p318) target = $region56
        $region55: #{tpu_custom_call.1} parent=51 // pred_region
          %321 = dma.done %s314, 128
        $region56: #{tpu_custom_call.1} parent=51 // pred_fallthru
          _
        // Predicated region
        $region57: #{tpu_custom_call.1} parent=51 // pred_check
          %p322 = pneg %p90
        $region58: #{tpu_custom_call.1} parent=51 // pred_check_branch
          %324 = sbr.rel (%p322) target = $region60
        $region59: #{tpu_custom_call.1} parent=51 // pred_region
          %325 = dma.done [#allocation6], 128
        $region60: #{tpu_custom_call.1} parent=51 // pred_fallthru
          _
        // Predicated region
        $region61: #{tpu_custom_call.1} parent=51 // pred_check
          %p326 = pneg %p111
        $region62: #{tpu_custom_call.1} parent=51 // pred_check_branch
          %328 = sbr.rel (%p326) target = $region64
        $region63: #{tpu_custom_call.1} parent=51 // pred_region
          %329 = dma.done [#allocation6], 128
        $region64: #{tpu_custom_call.1} parent=51 // pred_fallthru
          _
        // Predicated region
        $region65: #{tpu_custom_call.1} parent=51 // pred_check
          %p330 = pneg %p195
        $region66: #{tpu_custom_call.1} parent=51 // pred_check_branch
          %332 = sbr.rel (%p330) target = $region68
        $region67: #{tpu_custom_call.1} parent=51 // pred_region
          %333 = dma.done [#allocation9], 512
        $region68: #{tpu_custom_call.1} parent=51 // pred_fallthru
          _
        %s334 = sand.u32 %s35, 1
        %s335 = scalar_lea.sflag [#allocation3], %s334
        %s336 = sand.u32 %s35, 1
        %s337 = smul.addr %s336, 8
        %s338 = scalar_lea.vmem [#allocation2], %s337
        %p339 = pneg %p48
        %p340 = pneg %p45
        %p341 = pneg %p69
        %p342 = pneg %p66
        %p343 = pneg %p90
        %p344 = pneg %p87
        %p345 = pneg %p111
        %p346 = pneg %p108
        %p347 = pneg %p132
        %p348 = pneg %p129
        %p349 = pneg %p153
        %p350 = pneg %p150
        %p351 = pneg %p174
        %p352 = pneg %p171
        %p353 = pneg %p195
        %p354 = pneg %p192
        %p355 = pneg %p221
        %p356 = pneg %p218
        %s357 = sand.u32 %s208, 1
        %s358 = scalar_lea.sflag [#allocation4], %s357
        %s359 = sand.u32 %s208, 1
        %s360 = smul.addr %s359, 16
        %s361 = scalar_lea.vmem [#allocation10], %s360
        %v362 = vld [vmem:[%s317] sm:$0xff]
        %v363 = vld [vmem:[%s6] sm:$0xff]
        %v364 = vld [vmem:[%s6 + $0x8] sm:$0xff]
        %v365 = vld [vmem:[%s6 + $0x10] sm:$0x1]
        %v366 = vld [vmem:[%s6 + $0x18] sm:$0x1]
        %v367 = vld [vmem:[#allocation8] sm:$0xff]
        %v368 = vld [vmem:[#allocation8 + $0x8] sm:$0xff]
        %v369 = vld [vmem:[#allocation8 + $0x10] sm:$0x1]
        %v370 = vld [vmem:[#allocation8 + $0x18] sm:$0x1]
        %v371 = vld [vmem:[%s1] sm:$0xff]
        %v373 = vcombine.high %v362, %v362
        %375 = vrot.lane.b32.xlu0 %v362, 34
        %v376 = vpop.permute.xlu0 %375
        %377 = vrot.lane.b32.xlu0 %v373, 34
        %v378 = vpop.permute.xlu0 %377
        %v379 = vlaneseq
        %v380 = vand.u32 %v379, 127
        %vm381 = vcmp.lt.s32.totalorder %v380, 34
        %v382 = vsel %vm381, %v376, %v378
        %v383 = vsel %vm381, %v378, %v376
        %v384 = vlaneseq
        %v385 = vshrl.u32 %v384, 7
        %v386 = vsub.s32 0, %v385
        %v387 = vrot.slane %v363, %v386
        %v388 = vlaneseq
        %v389 = vshrl.u32 %v388, 7
        %v390 = vsub.s32 0, %v389
        %v391 = vrot.slane %v364, %v390
        %v392 = vmul.f32 %v383, %v387
        %v393 = vmul.f32 %v382, %v391
        %394 = vrot.lane.b32.xlu0 %v362, 32
        %v395 = vpop.permute.xlu0 %394
        %396 = vrot.lane.b32.xlu0 %v373, 32
        %v397 = vpop.permute.xlu0 %396
        %vm398 = vcmp.lt.s32.totalorder %v380, 32
        %v399 = vsel %vm398, %v395, %v397
        %v400 = vsel %vm398, %v397, %v395
        %v401 = vlaneseq
        %v402 = vshrl.u32 %v401, 7
        %v403 = vsub.s32 1, %v402
        %v404 = vrot.slane %v363, %v403
        %v405 = vlaneseq
        %v406 = vshrl.u32 %v405, 7
        %v407 = vsub.s32 1, %v406
        %v408 = vrot.slane %v364, %v407
        %v409 = vmul.f32 %v400, %v404
        %v410 = vmul.f32 %v399, %v408
        %411 = vrot.lane.b32.xlu0 %v362, 30
        %v412 = vpop.permute.xlu0 %411
        %413 = vrot.lane.b32.xlu0 %v373, 30
        %v414 = vpop.permute.xlu0 %413
        %vm415 = vcmp.lt.s32.totalorder %v380, 30
        %v416 = vsel %vm415, %v412, %v414
        %v417 = vsel %vm415, %v414, %v412
        %v418 = vlaneseq
        %v419 = vshrl.u32 %v418, 7
        %v420 = vsub.s32 2, %v419
        %v421 = vrot.slane %v363, %v420
        %v422 = vlaneseq
        %v423 = vshrl.u32 %v422, 7
        %v424 = vsub.s32 2, %v423
        %v425 = vrot.slane %v364, %v424
        %v426 = vmul.f32 %v417, %v421
        %v427 = vmul.f32 %v416, %v425
        %428 = vrot.lane.b32.xlu0 %v362, 2
        %v429 = vpop.permute.xlu0 %428
        %430 = vrot.lane.b32.xlu0 %v373, 2
        %v431 = vpop.permute.xlu0 %430
        %vm432 = vcmp.lt.s32.totalorder %v380, 2
        %v433 = vsel %vm432, %v429, %v431
        %v434 = vsel %vm432, %v431, %v429
        %v435 = vlaneseq
        %v436 = vshrl.u32 %v435, 7
        %v437 = vsub.s32 3, %v436
        %v438 = vrot.slane %v363, %v437
        %v439 = vlaneseq
        %v440 = vshrl.u32 %v439, 7
        %v441 = vsub.s32 3, %v440
        %v442 = vrot.slane %v364, %v441
        %v443 = vmul.f32 %v434, %v438
        %v444 = vmul.f32 %v433, %v442
        %445 = vrot.lane.b32.xlu0 %v362, 126
        %v446 = vpop.permute.xlu0 %445
        %447 = vrot.lane.b32.xlu0 %v373, 126
        %v448 = vpop.permute.xlu0 %447
        %vm449 = vcmp.lt.s32.totalorder %v380, 126
        %v450 = vsel %vm449, %v446, %v448
        %v451 = vsel %vm449, %v448, %v446
        %v452 = vlaneseq
        %v453 = vshrl.u32 %v452, 7
        %v454 = vsub.s32 5, %v453
        %v455 = vrot.slane %v363, %v454
        %v456 = vlaneseq
        %v457 = vshrl.u32 %v456, 7
        %v458 = vsub.s32 5, %v457
        %v459 = vrot.slane %v364, %v458
        %v460 = vmul.f32 %v450, %v455
        %v461 = vmul.f32 %v451, %v459
        %462 = vrot.lane.b32.xlu0 %v362, 98
        %v463 = vpop.permute.xlu0 %462
        %464 = vrot.lane.b32.xlu0 %v373, 98
        %v465 = vpop.permute.xlu0 %464
        %vm466 = vcmp.lt.s32.totalorder %v380, 98
        %v467 = vsel %vm466, %v463, %v465
        %v468 = vsel %vm466, %v465, %v463
        %v469 = vlaneseq
        %v470 = vshrl.u32 %v469, 7
        %v471 = vsub.s32 6, %v470
        %v472 = vrot.slane %v363, %v471
        %v473 = vlaneseq
        %v474 = vshrl.u32 %v473, 7
        %v475 = vsub.s32 6, %v474
        %v476 = vrot.slane %v364, %v475
        %v477 = vmul.f32 %v467, %v472
        %v478 = vmul.f32 %v468, %v476
        %479 = vrot.lane.b32.xlu0 %v362, 96
        %v480 = vpop.permute.xlu0 %479
        %481 = vrot.lane.b32.xlu0 %v373, 96
        %v482 = vpop.permute.xlu0 %481
        %vm483 = vcmp.lt.s32.totalorder %v380, 96
        %v484 = vsel %vm483, %v480, %v482
        %v485 = vsel %vm483, %v482, %v480
        %v486 = vlaneseq
        %v487 = vshrl.u32 %v486, 7
        %v488 = vsub.s32 7, %v487
        %v489 = vrot.slane %v363, %v488
        %v490 = vlaneseq
        %v491 = vshrl.u32 %v490, 7
        %v492 = vsub.s32 7, %v491
        %v493 = vrot.slane %v364, %v492
        %v494 = vmul.f32 %v484, %v489
        %v495 = vmul.f32 %v485, %v493
        %496 = vrot.lane.b32.xlu0 %v362, 94
        %v497 = vpop.permute.xlu0 %496
        %498 = vrot.lane.b32.xlu0 %v373, 94
        %v499 = vpop.permute.xlu0 %498
        %vm500 = vcmp.lt.s32.totalorder %v380, 94
        %v501 = vsel %vm500, %v497, %v499
        %v502 = vsel %vm500, %v499, %v497
        %v503 = vlaneseq
        %v504 = vshrl.u32 %v503, 7
        %v505 = vsub.s32 0, %v504
        %v506 = vrot.slane %v365, %v505
        %v507 = vlaneseq
        %v508 = vshrl.u32 %v507, 7
        %v509 = vsub.s32 0, %v508
        %v510 = vrot.slane %v366, %v509
        %v511 = vmul.f32 %v501, %v506
        %v512 = vmul.f32 %v502, %v510
        %v515 = vrot.slane %v409, 4
        %v516 = vrot.slane %v410, 4
        %v521 = vrot.slane %v443, 4
        %v522 = vrot.slane %v444, 4
        %v527 = vrot.slane %v460, 4
        %v528 = vrot.slane %v461, 4
        %v533 = vrot.slane %v494, 4
        %v534 = vrot.slane %v495, 4
        %vm537 = vcmask 1043456
        %v538 = vsel %vm537, %v392, %v515
        %v539 = vsel %vm537, %v393, %v516
        %v540 = vsel %vm537, %v426, %v521
        %v541 = vsel %vm537, %v427, %v522
        %v542 = vsel %vm537, %v362, %v527
        %v543 = vsel %vm537, %v373, %v528
        %v544 = vsel %vm537, %v477, %v533
        %v545 = vsel %vm537, %v478, %v534
        %v546 = vld [vmem:[%s4] sm:$0xff]
        %548 = vset.pattern.permute.xlu0 0
        %549 = vperm.xlu0 %548, %v546
        %v550 = vpop.permute.xlu0 %549
        %vm552 = vcmask 293888
        %v554 = vsel %vm552, %v371, 0
        %v557 = vsel %vm537, %v511, 0
        %v560 = vsel %vm537, %v512, 0
        %562 = vmatprep.subr.mxu0 %v539
        %563 = vmatpush1.msra.mxu0 %v538
        %564 = vmatprep.subr.mxu0 %v541
        %565 = vmatpush1.msra.mxu0 %v540
        %566 = vmatprep.subr.mxu0 %v543
        %567 = vmatpush1.msra.mxu0 %v542
        %568 = vmatprep.subr.mxu0 %v545
        %569 = vmatpush1.msra.mxu0 %v544
        %570 = vmatprep.subr.mxu0 %v560
        %571 = vmatpush1.msra.mxu0 %v557
        %572 = vmatprep.subr.mxu0 0.0
        %573 = vmatpush1.msra.mxu0 0.0
        %574 = vmatprep.subr.mxu0 0.0
        %575 = vmatpush1.msra.mxu0 0.0
        %576 = vmatprep.subr.mxu0 0.0
        %577 = vmatpush1.msra.mxu0 0.0
        %578 = vmatprep.subr.mxu0 0.0
        %579 = vmatpush1.msra.mxu0 0.0
        %580 = vmatprep.subr.mxu0 0.0
        %581 = vmatpush1.msra.mxu0 0.0
        %582 = vmatprep.subr.mxu0 0.0
        %583 = vmatpush1.msra.mxu0 0.0
        %584 = vmatprep.subr.mxu0 0.0
        %585 = vmatpush1.msra.mxu0 0.0
        %586 = vmatprep.subr.mxu0 0.0
        %587 = vmatpush1.msra.mxu0 0.0
        %588 = vmatprep.subr.mxu0 0.0
        %589 = vmatpush1.msra.mxu0 0.0
        %590 = vmatprep.subr.mxu0 0.0
        %591 = vmatpush1.msra.mxu0 0.0
        %592 = vmatprep.subr.mxu0 0.0
        %593 = vmatpush1.msra.mxu0 0.0
        %594 = vmatprep.subr.mxu0 0.0
        %595 = vmatpush1.msra.mxu0 0.0
        %596 = vmatprep.subr.mxu0 0.0
        %597 = vmatpush1.msra.mxu0 0.0
        %598 = vmatprep.subr.mxu0 0.0
        %599 = vmatpush1.msra.mxu0 0.0
        %600 = vmatprep.subr.mxu0 0.0
        %601 = vmatpush1.msra.mxu0 0.0
        %602 = vmatprep.subr.mxu0 0.0
        %603 = vmatpush1.msra.mxu0 0.0
        %604 = vmatprep.subr.mxu0 0.0
        %605 = vmatpush1.msra.mxu0 0.0
        %606 = vmatprep.subr.mxu0 0.0
        %607 = vmatpush1.msra.mxu0 0.0
        %608 = vmatprep.subr.mxu0 0.0
        %609 = vmatpush1.msra.mxu0 0.0
        %610 = vmatprep.subr.mxu0 0.0
        %611 = vmatpush1.msra.mxu0 0.0
        %612 = vmatprep.subr.mxu0 0.0
        %613 = vmatpush1.msra.mxu0 0.0
        %614 = vmatprep.subr.mxu0 0.0
        %615 = vmatpush1.msra.mxu0 0.0
        %616 = vmatprep.subr.mxu0 0.0
        %617 = vmatpush1.msra.mxu0 0.0
        %618 = vmatprep.subr.mxu0 0.0
        %619 = vmatpush1.msra.mxu0 0.0
        %620 = vmatprep.subr.mxu0 0.0
        %621 = vmatpush1.msra.mxu0 0.0
        %622 = vmatprep.subr.mxu0 0.0
        %623 = vmatpush1.msra.mxu0 0.0
        %624 = vmatprep.subr.mxu0 0.0
        %625 = vmatpush1.msra.mxu0 0.0
        %626 = vmatprep.mubr.f32.mxu0 0.0
        %627 = vmatmul.mubr.f32.gmra.mrb[0].mxu0 %v554
        %v628 = vpop.f32.mrb[0].mxu0
        %v629 = vadd.f32 %v550, %v628
        %v630 = vpop.f32.mrb[0].mxu0
        %v631 = vadd.f32 %v550, %v630
        %632 = vdwg.mxu0
        %v633 = vmax.f32 %v629, 0.0
        %v634 = vmax.f32 %v631, 0.0
        %v635 = vld [vmem:[#allocation5] sm:$0xff]
        %636 = vrot.lane.b32.xlu0 %v633, 34
        %v637 = vpop.permute.xlu0 %636
        %638 = vrot.lane.b32.xlu0 %v634, 34
        %v639 = vpop.permute.xlu0 %638
        %v640 = vsel %vm381, %v637, %v639
        %v641 = vsel %vm381, %v639, %v637
        %v642 = vmul.f32 %v641, %v387
        %v643 = vmul.f32 %v640, %v391
        %644 = vrot.lane.b32.xlu0 %v633, 32
        %v645 = vpop.permute.xlu0 %644
        %646 = vrot.lane.b32.xlu0 %v634, 32
        %v647 = vpop.permute.xlu0 %646
        %v648 = vsel %vm398, %v645, %v647
        %v649 = vsel %vm398, %v647, %v645
        %v650 = vmul.f32 %v649, %v404
        %v651 = vmul.f32 %v648, %v408
        %652 = vrot.lane.b32.xlu0 %v633, 30
        %v653 = vpop.permute.xlu0 %652
        %654 = vrot.lane.b32.xlu0 %v634, 30
        %v655 = vpop.permute.xlu0 %654
        %v656 = vsel %vm415, %v653, %v655
        %v657 = vsel %vm415, %v655, %v653
        %v658 = vmul.f32 %v657, %v421
        %v659 = vmul.f32 %v656, %v425
        %660 = vrot.lane.b32.xlu0 %v633, 2
        %v661 = vpop.permute.xlu0 %660
        %662 = vrot.lane.b32.xlu0 %v634, 2
        %v663 = vpop.permute.xlu0 %662
        %v664 = vsel %vm432, %v661, %v663
        %v665 = vsel %vm432, %v663, %v661
        %v666 = vmul.f32 %v665, %v438
        %v667 = vmul.f32 %v664, %v442
        %668 = vrot.lane.b32.xlu0 %v633, 126
        %v669 = vpop.permute.xlu0 %668
        %670 = vrot.lane.b32.xlu0 %v634, 126
        %v671 = vpop.permute.xlu0 %670
        %v672 = vsel %vm449, %v669, %v671
        %v673 = vsel %vm449, %v671, %v669
        %v674 = vmul.f32 %v672, %v455
        %v675 = vmul.f32 %v673, %v459
        %676 = vrot.lane.b32.xlu0 %v633, 98
        %v677 = vpop.permute.xlu0 %676
        %678 = vrot.lane.b32.xlu0 %v634, 98
        %v679 = vpop.permute.xlu0 %678
        %v680 = vsel %vm466, %v677, %v679
        %v681 = vsel %vm466, %v679, %v677
        %v682 = vmul.f32 %v680, %v472
        %v683 = vmul.f32 %v681, %v476
        %684 = vrot.lane.b32.xlu0 %v633, 96
        %v685 = vpop.permute.xlu0 %684
        %686 = vrot.lane.b32.xlu0 %v634, 96
        %v687 = vpop.permute.xlu0 %686
        %v688 = vsel %vm483, %v685, %v687
        %v689 = vsel %vm483, %v687, %v685
        %v690 = vmul.f32 %v688, %v489
        %v691 = vmul.f32 %v689, %v493
        %692 = vrot.lane.b32.xlu0 %v633, 94
        %v693 = vpop.permute.xlu0 %692
        %694 = vrot.lane.b32.xlu0 %v634, 94
        %v695 = vpop.permute.xlu0 %694
        %v696 = vsel %vm500, %v693, %v695
        %v697 = vsel %vm500, %v695, %v693
        %v698 = vmul.f32 %v696, %v506
        %v699 = vmul.f32 %v697, %v510
        %v700 = vld [vmem:[%s5] sm:$0xff]
        %702 = vset.pattern.permute.xlu0 0
        %703 = vperm.xlu0 %702, %v700
        %v704 = vpop.permute.xlu0 %703
        %vm706 = vcmask 588800
        %v708 = vsel %vm706, %v635, 0
        %710 = vmatprep.subr.mxu0 %v643
        %711 = vmatpush1.msra.mxu0 %v642
        %712 = vmatprep.subr.mxu0 %v651
        %713 = vmatpush1.msra.mxu0 %v650
        %714 = vmatprep.subr.mxu0 %v659
        %715 = vmatpush1.msra.mxu0 %v658
        %716 = vmatprep.subr.mxu0 %v667
        %717 = vmatpush1.msra.mxu0 %v666
        %718 = vmatprep.subr.mxu0 %v634
        %719 = vmatpush1.msra.mxu0 %v633
        %720 = vmatprep.subr.mxu0 %v675
        %721 = vmatpush1.msra.mxu0 %v674
        %722 = vmatprep.subr.mxu0 %v683
        %723 = vmatpush1.msra.mxu0 %v682
        %724 = vmatprep.subr.mxu0 %v691
        %725 = vmatpush1.msra.mxu0 %v690
        %726 = vmatprep.subr.mxu0 %v699
        %727 = vmatpush1.msra.mxu0 %v698
        %728 = vmatprep.subr.mxu0 0.0
        %729 = vmatpush1.msra.mxu0 0.0
        %730 = vmatprep.subr.mxu0 0.0
        %731 = vmatpush1.msra.mxu0 0.0
        %732 = vmatprep.subr.mxu0 0.0
        %733 = vmatpush1.msra.mxu0 0.0
        %734 = vmatprep.subr.mxu0 0.0
        %735 = vmatpush1.msra.mxu0 0.0
        %736 = vmatprep.subr.mxu0 0.0
        %737 = vmatpush1.msra.mxu0 0.0
        %738 = vmatprep.subr.mxu0 0.0
        %739 = vmatpush1.msra.mxu0 0.0
        %740 = vmatprep.subr.mxu0 0.0
        %741 = vmatpush1.msra.mxu0 0.0
        %742 = vmatprep.subr.mxu0 0.0
        %743 = vmatpush1.msra.mxu0 0.0
        %744 = vmatprep.subr.mxu0 0.0
        %745 = vmatpush1.msra.mxu0 0.0
        %746 = vmatprep.subr.mxu0 0.0
        %747 = vmatpush1.msra.mxu0 0.0
        %748 = vmatprep.subr.mxu0 0.0
        %749 = vmatpush1.msra.mxu0 0.0
        %750 = vmatprep.subr.mxu0 0.0
        %751 = vmatpush1.msra.mxu0 0.0
        %752 = vmatprep.subr.mxu0 0.0
        %753 = vmatpush1.msra.mxu0 0.0
        %754 = vmatprep.subr.mxu0 0.0
        %755 = vmatpush1.msra.mxu0 0.0
        %756 = vmatprep.subr.mxu0 0.0
        %757 = vmatpush1.msra.mxu0 0.0
        %758 = vmatprep.subr.mxu0 0.0
        %759 = vmatpush1.msra.mxu0 0.0
        %760 = vmatprep.subr.mxu0 0.0
        %761 = vmatpush1.msra.mxu0 0.0
        %762 = vmatprep.subr.mxu0 0.0
        %763 = vmatpush1.msra.mxu0 0.0
        %764 = vmatprep.subr.mxu0 0.0
        %765 = vmatpush1.msra.mxu0 0.0
        %766 = vmatprep.subr.mxu0 0.0
        %767 = vmatpush1.msra.mxu0 0.0
        %768 = vmatprep.subr.mxu0 0.0
        %769 = vmatpush1.msra.mxu0 0.0
        %770 = vmatprep.subr.mxu0 0.0
        %771 = vmatpush1.msra.mxu0 0.0
        %772 = vmatprep.subr.mxu0 0.0
        %773 = vmatpush1.msra.mxu0 0.0
        %774 = vmatprep.mubr.f32.mxu0 0.0
        %775 = vmatmul.mubr.f32.gmra.mrb[0].mxu0 %v708
        %v776 = vpop.f32.mrb[0].mxu0
        %v777 = vadd.f32 %v704, %v776
        %v778 = vpop.f32.mrb[0].mxu0
        %v779 = vadd.f32 %v704, %v778
        %780 = vdwg.mxu0
        %v781 = vld [vmem:[#allocation7] sm:$0xff]
        %782 = vrot.lane.b32.xlu0 %v777, 51
        %v783 = vpop.permute.xlu0 %782
        %784 = vrot.lane.b32.xlu0 %v779, 51
        %v785 = vpop.permute.xlu0 %784
        %vm786 = vcmp.lt.s32.totalorder %v380, 51
        %v787 = vsel %vm786, %v783, %v785
        %v788 = vsel %vm786, %v785, %v783
        %v789 = vlaneseq
        %v790 = vshrl.u32 %v789, 7
        %v791 = vsub.s32 0, %v790
        %v792 = vrot.slane %v367, %v791
        %v793 = vlaneseq
        %v794 = vshrl.u32 %v793, 7
        %v795 = vsub.s32 0, %v794
        %v796 = vrot.slane %v368, %v795
        %v797 = vmul.f32 %v788, %v792
        %v798 = vmul.f32 %v787, %v796
        %799 = vrot.lane.b32.xlu0 %v777, 48
        %v800 = vpop.permute.xlu0 %799
        %801 = vrot.lane.b32.xlu0 %v779, 48
        %v802 = vpop.permute.xlu0 %801
        %vm803 = vcmp.lt.s32.totalorder %v380, 48
        %v804 = vsel %vm803, %v800, %v802
        %v805 = vsel %vm803, %v802, %v800
        %v806 = vlaneseq
        %v807 = vshrl.u32 %v806, 7
        %v808 = vsub.s32 1, %v807
        %v809 = vrot.slane %v367, %v808
        %v810 = vlaneseq
        %v811 = vshrl.u32 %v810, 7
        %v812 = vsub.s32 1, %v811
        %v813 = vrot.slane %v368, %v812
        %v814 = vmul.f32 %v805, %v809
        %v815 = vmul.f32 %v804, %v813
        %816 = vrot.lane.b32.xlu0 %v777, 45
        %v817 = vpop.permute.xlu0 %816
        %818 = vrot.lane.b32.xlu0 %v779, 45
        %v819 = vpop.permute.xlu0 %818
        %vm820 = vcmp.lt.s32.totalorder %v380, 45
        %v821 = vsel %vm820, %v817, %v819
        %v822 = vsel %vm820, %v819, %v817
        %v823 = vlaneseq
        %v824 = vshrl.u32 %v823, 7
        %v825 = vsub.s32 2, %v824
        %v826 = vrot.slane %v367, %v825
        %v827 = vlaneseq
        %v828 = vshrl.u32 %v827, 7
        %v829 = vsub.s32 2, %v828
        %v830 = vrot.slane %v368, %v829
        %v831 = vmul.f32 %v822, %v826
        %v832 = vmul.f32 %v821, %v830
        %833 = vrot.lane.b32.xlu0 %v777, 3
        %v834 = vpop.permute.xlu0 %833
        %835 = vrot.lane.b32.xlu0 %v779, 3
        %v836 = vpop.permute.xlu0 %835
        %vm837 = vcmp.lt.s32.totalorder %v380, 3
        %v838 = vsel %vm837, %v834, %v836
        %v839 = vsel %vm837, %v836, %v834
        %v840 = vlaneseq
        %v841 = vshrl.u32 %v840, 7
        %v842 = vsub.s32 3, %v841
        %v843 = vrot.slane %v367, %v842
        %v844 = vlaneseq
        %v845 = vshrl.u32 %v844, 7
        %v846 = vsub.s32 3, %v845
        %v847 = vrot.slane %v368, %v846
        %v848 = vmul.f32 %v839, %v843
        %v849 = vmul.f32 %v838, %v847
        %850 = vrot.lane.b32.xlu0 %v777, 125
        %v851 = vpop.permute.xlu0 %850
        %852 = vrot.lane.b32.xlu0 %v779, 125
        %v853 = vpop.permute.xlu0 %852
        %vm854 = vcmp.lt.s32.totalorder %v380, 125
        %v855 = vsel %vm854, %v851, %v853
        %v856 = vsel %vm854, %v853, %v851
        %v857 = vlaneseq
        %v858 = vshrl.u32 %v857, 7
        %v859 = vsub.s32 5, %v858
        %v860 = vrot.slane %v367, %v859
        %v861 = vlaneseq
        %v862 = vshrl.u32 %v861, 7
        %v863 = vsub.s32 5, %v862
        %v864 = vrot.slane %v368, %v863
        %v865 = vmul.f32 %v855, %v860
        %v866 = vmul.f32 %v856, %v864
        %867 = vrot.lane.b32.xlu0 %v777, 83
        %v868 = vpop.permute.xlu0 %867
        %869 = vrot.lane.b32.xlu0 %v779, 83
        %v870 = vpop.permute.xlu0 %869
        %vm871 = vcmp.lt.s32.totalorder %v380, 83
        %v872 = vsel %vm871, %v868, %v870
        %v873 = vsel %vm871, %v870, %v868
        %v874 = vlaneseq
        %v875 = vshrl.u32 %v874, 7
        %v876 = vsub.s32 6, %v875
        %v877 = vrot.slane %v367, %v876
        %v878 = vlaneseq
        %v879 = vshrl.u32 %v878, 7
        %v880 = vsub.s32 6, %v879
        %v881 = vrot.slane %v368, %v880
        %v882 = vmul.f32 %v872, %v877
        %v883 = vmul.f32 %v873, %v881
        %884 = vrot.lane.b32.xlu0 %v777, 80
        %v885 = vpop.permute.xlu0 %884
        %886 = vrot.lane.b32.xlu0 %v779, 80
        %v887 = vpop.permute.xlu0 %886
        %vm888 = vcmp.lt.s32.totalorder %v380, 80
        %v889 = vsel %vm888, %v885, %v887
        %v890 = vsel %vm888, %v887, %v885
        %v891 = vlaneseq
        %v892 = vshrl.u32 %v891, 7
        %v893 = vsub.s32 7, %v892
        %v894 = vrot.slane %v367, %v893
        %v895 = vlaneseq
        %v896 = vshrl.u32 %v895, 7
        %v897 = vsub.s32 7, %v896
        %v898 = vrot.slane %v368, %v897
        %v899 = vmul.f32 %v889, %v894
        %v900 = vmul.f32 %v890, %v898
        %901 = vrot.lane.b32.xlu0 %v777, 77
        %v902 = vpop.permute.xlu0 %901
        %903 = vrot.lane.b32.xlu0 %v779, 77
        %v904 = vpop.permute.xlu0 %903
        %vm905 = vcmp.lt.s32.totalorder %v380, 77
        %v906 = vsel %vm905, %v902, %v904
        %v907 = vsel %vm905, %v904, %v902
        %v908 = vlaneseq
        %v909 = vshrl.u32 %v908, 7
        %v910 = vsub.s32 0, %v909
        %v911 = vrot.slane %v369, %v910
        %v912 = vlaneseq
        %v913 = vshrl.u32 %v912, 7
        %v914 = vsub.s32 0, %v913
        %v915 = vrot.slane %v370, %v914
        %v916 = vmul.f32 %v906, %v911
        %v917 = vmul.f32 %v907, %v915
        %v919 = vsel %vm706, %v781, 0
        %921 = vmatprep.subr.mxu0 %v798
        %922 = vmatpush1.msra.mxu0 %v797
        %923 = vmatprep.subr.mxu0 %v815
        %924 = vmatpush1.msra.mxu0 %v814
        %925 = vmatprep.subr.mxu0 %v832
        %926 = vmatpush1.msra.mxu0 %v831
        %927 = vmatprep.subr.mxu0 %v849
        %928 = vmatpush1.msra.mxu0 %v848
        %929 = vmatprep.subr.mxu0 %v779
        %930 = vmatpush1.msra.mxu0 %v777
        %931 = vmatprep.subr.mxu0 %v866
        %932 = vmatpush1.msra.mxu0 %v865
        %933 = vmatprep.subr.mxu0 %v883
        %934 = vmatpush1.msra.mxu0 %v882
        %935 = vmatprep.subr.mxu0 %v900
        %936 = vmatpush1.msra.mxu0 %v899
        %937 = vmatprep.subr.mxu0 %v917
        %938 = vmatpush1.msra.mxu0 %v916
        %939 = vmatprep.subr.mxu0 0.0
        %940 = vmatpush1.msra.mxu0 0.0
        %941 = vmatprep.subr.mxu0 0.0
        %942 = vmatpush1.msra.mxu0 0.0
        %943 = vmatprep.subr.mxu0 0.0
        %944 = vmatpush1.msra.mxu0 0.0
        %945 = vmatprep.subr.mxu0 0.0
        %946 = vmatpush1.msra.mxu0 0.0
        %947 = vmatprep.subr.mxu0 0.0
        %948 = vmatpush1.msra.mxu0 0.0
        %949 = vmatprep.subr.mxu0 0.0
        %950 = vmatpush1.msra.mxu0 0.0
        %951 = vmatprep.subr.mxu0 0.0
        %952 = vmatpush1.msra.mxu0 0.0
        %953 = vmatprep.subr.mxu0 0.0
        %954 = vmatpush1.msra.mxu0 0.0
        %955 = vmatprep.subr.mxu0 0.0
        %956 = vmatpush1.msra.mxu0 0.0
        %957 = vmatprep.subr.mxu0 0.0
        %958 = vmatpush1.msra.mxu0 0.0
        %959 = vmatprep.subr.mxu0 0.0
        %960 = vmatpush1.msra.mxu0 0.0
        %961 = vmatprep.subr.mxu0 0.0
        %962 = vmatpush1.msra.mxu0 0.0
        %963 = vmatprep.subr.mxu0 0.0
        %964 = vmatpush1.msra.mxu0 0.0
        %965 = vmatprep.subr.mxu0 0.0
        %966 = vmatpush1.msra.mxu0 0.0
        %967 = vmatprep.subr.mxu0 0.0
        %968 = vmatpush1.msra.mxu0 0.0
        %969 = vmatprep.subr.mxu0 0.0
        %970 = vmatpush1.msra.mxu0 0.0
        %971 = vmatprep.subr.mxu0 0.0
        %972 = vmatpush1.msra.mxu0 0.0
        %973 = vmatprep.subr.mxu0 0.0
        %974 = vmatpush1.msra.mxu0 0.0
        %975 = vmatprep.subr.mxu0 0.0
        %976 = vmatpush1.msra.mxu0 0.0
        %977 = vmatprep.subr.mxu0 0.0
        %978 = vmatpush1.msra.mxu0 0.0
        %979 = vmatprep.subr.mxu0 0.0
        %980 = vmatpush1.msra.mxu0 0.0
        %981 = vmatprep.subr.mxu0 0.0
        %982 = vmatpush1.msra.mxu0 0.0
        %983 = vmatprep.subr.mxu0 0.0
        %984 = vmatpush1.msra.mxu0 0.0
        %985 = vmatprep.mubr.f32.mxu0 0.0
        %986 = vmatmul.mubr.f32.gmra.mrb[0].mxu0 %v919
        %v987 = vpop.f32.mrb[0].mxu0
        %v988 = vadd.f32 0.0, %v987
        %v989 = vpop.f32.mrb[0].mxu0
        %v990 = vadd.f32 0.0, %v989
        %991 = vdwg.mxu0
        %v992 = vmax.f32 %v988, 0.0
        %v993 = vmax.f32 %v990, 0.0
        %994 = vst [vmem:[%s361] sm:$0xff] %v992
        %995 = vst [vmem:[%s361 + $0x8] sm:$0xff] %v993
        %s996 = sand.u32 %s208, 1
        %s997 = scalar_lea.sflag [#allocation4], %s996
        %s998 = sand.u32 %s208, 1
        %s999 = smul.addr %s998, 16
        %s1000 = scalar_lea.vmem [#allocation10], %s999
        // Predicated region
        $region69: #{tpu_custom_call.1} parent=51 // pred_check
          %p1001 = pneg %p218
        $region70: #{tpu_custom_call.1} parent=51 // pred_check_branch
          %1003 = sbr.rel (%p1001) target = $region72
        $region71: #{tpu_custom_call.1} parent=51 // pred_region
          %s1005 = ssub.s32 256, 256
          %1006 = vsyncadd %s997, %s1005
          %s1007 = smul.addr %s27, 2
          %s1008 = smul.addr %s1007, 128
          %s1009 = scalar_lea.hbm %s8, %s1008
          %s1011 = sshll.u32 %s1000, 4
          %s1012 = int_to_ptr.vmem [resolvable:$true] %s1011
          %1014 = dma.vmem_to_hbm [thread:$0]  %s1012, 256, %s1009, %s997
        $region72: #{tpu_custom_call.1} parent=51 // pred_fallthru
          _
      $region52: #{tpu_custom_call.1} parent=5 // pred_fallthru
        _
      %p1015 = scmp.le.s32.totalorder 2, %s22
      // Predicated region
      $region73: #{tpu_custom_call.1} parent=5 // pred_check
        %p1016 = pneg %p1015
      $region74: #{tpu_custom_call.1} parent=5 // pred_check_branch
        %1018 = sbr.rel (%p1016) target = $region76
      $region75: #{tpu_custom_call.1} parent=5 // pred_region
        %s1019 = ssub.s32 %s22, 2
        // Predicated region
        $region77: #{tpu_custom_call.1} parent=75 // pred_check
          %p1020 = pneg %p224
        $region78: #{tpu_custom_call.1} parent=75 // pred_check_branch
          %1022 = sbr.rel (%p1020) target = $region80
        $region79: #{tpu_custom_call.1} parent=75 // pred_region
          %s1023 = sand.u32 %s209, 1
          %s1024 = scalar_lea.sflag [#allocation4], %s1023
          %s1025 = sand.u32 %s209, 1
          %s1026 = smul.addr %s1025, 16
          %s1027 = scalar_lea.vmem [#allocation10], %s1026
          %1028 = dma.done %s1024, 256
        $region80: #{tpu_custom_call.1} parent=75 // pred_fallthru
          _
      $region76: #{tpu_custom_call.1} parent=5 // pred_fallthru
        _
    $region6: #{tpu_custom_call.1} parent=1 // loop_footer
      %s26 = sadd.s32 1, %s22
    $region7: #{tpu_custom_call.1} parent=1 // loop_footer_branch
      %21 = sbr.rel target = $region3
    $region8: #{tpu_custom_call.1} parent=1 // loop_exit
      _
    %1029 = vsyncpa [#allocation3], 1
    %s1030 = scalar_lea.sflag [#allocation3], 1
    %1031 = vsyncpa %s1030, 1
    %1032 = vsyncpa [#allocation6], 1
    %1033 = vsyncpa [#allocation9], 1
    %1034 = vsyncpa [#allocation4], 1
    %s1035 = scalar_lea.sflag [#allocation4], 1
    %1036 = vsyncpa %s1035, 1

</llo_original>
